<compile_context>
chip_gen: v5e
topology: v5e:2x2
jax: 0.10.0
libtpu: 0.0.40
codegen_flags: <defaults>
</compile_context>

<pallas_src>
import jax
import jax.numpy as jnp
from jax.experimental import pallas as pl
from jax.experimental.pallas import tpu as pltpu

_ROWS = 8                # f32 sublane minimum — all VMEM budget goes to the lane dim
_DEFAULT_TILE_D = 32768  # lanes per tile (per step); clamped to the data size
_PAD_ERR = -1e4          # relu(-1e4) = 0 and softplus(-1e4 - 1) underflows to 0 in f32


def _make_loss_kernel(c_lov: float, c_bce: float):
    """c_lov = alpha / N (per-image mean), c_bce = beta / (N*D) (global mean)."""

    def kernel(err_ref, grad_ref, out_ref, acc_ref):
        k = pl.program_id(1)

        @pl.when(k == 0)
        def _init():
            acc_ref[...] = jnp.zeros_like(acc_ref)

        err = err_ref[...]                       # f32 (8, tile_d) sorted hinge errors
        g = grad_ref[...]                        # f32 (8, tile_d) Lovász gradient

        # Lovász hinge elementwise term: relu(err_sorted) * grad.
        lov = jnp.maximum(err, 0.0) * g
        # BCEWithLogits recovered from the sorted errors: softplus(err - 1),
        # numerically stable form max(m,0) + log1p(exp(-|m|)).
        m = err - 1.0
        bce = jnp.maximum(m, 0.0) + jnp.log1p(jnp.exp(-jnp.abs(m)))

        # One fused, pre-scaled accumulator: halves acc VMEM traffic / vst slots.
        acc_ref[...] += c_lov * lov + c_bce * bce

        @pl.when(k == pl.num_programs(1) - 1)
        def _finalize():
            tot = jnp.sum(acc_ref[...], axis=1, keepdims=True)   # (8, 1)
            tot = jnp.sum(tot, axis=0, keepdims=True)            # (1, 1)
            out_ref[...] = tot.reshape(1, 1, 1)

    return kernel


def binary_bce_lovasz_hinge_loss(pred, target, alpha=0.5, beta=0.5, tile_d=None):
    """JAX/Pallas equivalent of BinaryBCELovaszHingeLoss.forward."""
    assert pred.shape == target.shape, "predictions and targets shapes don't match"
    n = pred.shape[0]
    x = pred.astype(jnp.float32).reshape(n, -1)
    t = target.astype(jnp.float32).reshape(n, -1)
    d = x.shape[1]

    # ---- plain-JAX prep: hinge errors, per-image descending sort, Lovász grad ----
    signs = 2.0 * t - 1.0
    errors = 1.0 - x * signs
    neg_sorted, gt_sorted = jax.lax.sort((-errors, t), num_keys=1)   # descending errors
    errors_sorted = -neg_sorted
    gts = jnp.sum(gt_sorted, axis=1, keepdims=True)
    intersection = gts - jnp.cumsum(gt_sorted, axis=1)
    union = gts + jnp.cumsum(1.0 - gt_sorted, axis=1)
    jaccard = 1.0 - intersection / union
    grad = jnp.concatenate([jaccard[:, :1], jaccard[:, 1:] - jaccard[:, :-1]], axis=1)

    # ---- sublane-dense (8, L) layout: global sums only, so row structure is
    # irrelevant inside the kernel; only the flat tail is padded ----
    total = n * d
    l_needed = -(-total // _ROWS)
    l_needed = ((l_needed + 127) // 128) * 128

    td = _DEFAULT_TILE_D if tile_d is None else int(tile_d)
    td = max(128, (td // 128) * 128)
    td = min(td, l_needed)

    n_tiles = -(-total // (_ROWS * td))
    num_splits = 2 if n_tiles >= 2 else 1      # leading parallel axis: both TCs on v7x
    tiles_per_split = -(-n_tiles // num_splits)
    n_tiles = tiles_per_split * num_splits
    l_pad = n_tiles * td
    total_pad = _ROWS * l_pad

    err_flat = jnp.pad(errors_sorted.reshape(-1), (0, total_pad - total),
                       constant_values=_PAD_ERR)
    grad_flat = jnp.pad(grad.reshape(-1), (0, total_pad - total),
                        constant_values=0.0)
    err2 = err_flat.reshape(_ROWS, l_pad)
    grad2 = grad_flat.reshape(_ROWS, l_pad)

    kernel = _make_loss_kernel(float(alpha) / float(n), float(beta) / float(n * d))

    in_spec = pl.BlockSpec((_ROWS, td), lambda c, k: (0, c * tiles_per_split + k))

    # Working set: 2 streams double-buffered + 1 accumulator, all f32.
    stream_bytes = 2 * 2 * _ROWS * td * 4
    acc_bytes = _ROWS * td * 4
    vmem_limit = int((stream_bytes + acc_bytes) * 3 // 2) + (2 << 20)
    vmem_limit = min(max(vmem_limit, 16 << 20), 48 << 20)   # cap under v7x 64 MiB/TC

    out = pl.pallas_call(
        kernel,
        out_shape=jax.ShapeDtypeStruct((num_splits, 1, 1), jnp.float32),
        grid_spec=pltpu.PrefetchScalarGridSpec(
            num_scalar_prefetch=0,
            grid=(num_splits, tiles_per_split),          # (core split, feature tiles)
            in_specs=[in_spec, in_spec],
            out_specs=pl.BlockSpec((1, 1, 1), lambda c, k: (c, 0, 0)),
            scratch_shapes=[pltpu.VMEM((_ROWS, td), jnp.float32)],
        ),
        compiler_params=pltpu.CompilerParams(
            dimension_semantics=("parallel", "arbitrary"),
            vmem_limit_bytes=vmem_limit,
        ),
    )(err2, grad2)
    return jnp.sum(out)   # add the (at most 2) per-core partials


def _reference(pred, target, alpha=0.5, beta=0.5):
    """Pure-JAX reference matching the PyTorch BinaryBCELovaszHingeLoss."""
    x = pred.astype(jnp.float32)
    t = target.astype(jnp.float32)
    bce = jnp.mean(jnp.maximum(x, 0.0) - x * t + jnp.log1p(jnp.exp(-jnp.abs(x))))
    xf = x.reshape(x.shape[0], -1)
    tf = t.reshape(t.shape[0], -1)
    signs = 2.0 * tf - 1.0
    errors = 1.0 - xf * signs
    neg_sorted, gt_sorted = jax.lax.sort((-errors, tf), num_keys=1)
    errors_sorted = -neg_sorted
    gts = jnp.sum(gt_sorted, axis=1, keepdims=True)
    intersection = gts - jnp.cumsum(gt_sorted, axis=1)
    union = gts + jnp.cumsum(1.0 - gt_sorted, axis=1)
    jaccard = 1.0 - intersection / union
    grad = jnp.concatenate([jaccard[:, :1], jaccard[:, 1:] - jaccard[:, :-1]], axis=1)
    lovasz = jnp.mean(jnp.sum(jnp.maximum(errors_sorted, 0.0) * grad, axis=1))
    return alpha * lovasz + beta * bce


if __name__ == "__main__":
    key = jax.random.PRNGKey(0)

    cases = [
        ((2, 4, 16, 16), None),   # single tile, single core split
        ((2, 1, 64, 64), 128),    # multi-step accumulation + 2-way parallel split
        ((3, 1, 10, 10), None),   # ragged tail: heavy padding path
    ]
    for shape, td in cases:
        k1, k2, key = jax.random.split(key, 3)
        pred = jax.random.normal(k1, shape, dtype=jnp.float32)
        target = (jax.random.uniform(k2, shape) > 0.5).astype(jnp.float32)

        loss = binary_bce_lovasz_hinge_loss(pred, target, alpha=0.5, beta=0.5, tile_d=td)
        jax.block_until_ready(loss)

        ref = _reference(pred, target, alpha=0.5, beta=0.5)
        assert jnp.allclose(loss, ref, atol=1e-4, rtol=1e-4), (shape, loss, ref)

    print("KERNEL_OK")
</pallas_src>

<mosaic_0001>
module attributes {stable_mosaic.version = 11 : i64} {
  func.func @kernel(%arg0: i32, %arg1: i32, %arg2: memref<8x256xf32, #tpu.memory_space<vmem>>, %arg3: memref<8x256xf32, #tpu.memory_space<vmem>>, %arg4: memref<1x1x1xf32, #tpu.memory_space<vmem>>, %arg5: memref<8x256xf32, #tpu.memory_space<vmem>>) attributes {dimension_semantics = [#tpu.dimension_semantics<parallel>, #tpu.dimension_semantics<arbitrary>], iteration_bounds = array<i64: 1, 1>, scalar_prefetch = 0 : i64, scratch_operands = 1 : i64, tpu.core_type = #tpu.core_type<tc>, window_params = [{transform_indices = @transform_0, window_bounds = array<i64: 8, 256>}, {transform_indices = @transform_1, window_bounds = array<i64: 8, 256>}, {transform_indices = @transform_2, window_bounds = array<i64: 1, 1, 1>}]} {
    %c0_i32 = arith.constant 0 : i32
    %0 = arith.cmpi eq, %arg1, %c0_i32 : i32
    %1 = arith.extui %0 : i1 to i32
    %c0_i32_0 = arith.constant 0 : i32
    %2 = arith.cmpi ne, %1, %c0_i32_0 : i32
    scf.if %2 {
      %cst_15 = arith.constant 0.000000e+00 : f32
      %29 = vector.broadcast %cst_15 : f32 to vector<8x256xf32>
      %c0_16 = arith.constant 0 : index
      %c0_17 = arith.constant 0 : index
      %30 = vector.load %arg5[%c0_16, %c0_17] : memref<8x256xf32, #tpu.memory_space<vmem>>, vector<8x256xf32>
      tpu.vector_store %arg5[%c0_16, %c0_17], %29 {strides = array<i32>} : memref<8x256xf32, #tpu.memory_space<vmem>>, vector<8x256xf32>,
    } else {
    }
    %c0 = arith.constant 0 : index
    %c0_1 = arith.constant 0 : index
    %3 = vector.load %arg2[%c0, %c0_1] : memref<8x256xf32, #tpu.memory_space<vmem>>, vector<8x256xf32>
    %c0_2 = arith.constant 0 : index
    %c0_3 = arith.constant 0 : index
    %4 = vector.load %arg3[%c0_2, %c0_3] : memref<8x256xf32, #tpu.memory_space<vmem>>, vector<8x256xf32>
    %cst = arith.constant 0.000000e+00 : f32
    %5 = vector.broadcast %cst : f32 to vector<8x256xf32>
    %6 = arith.maximumf %3, %5 : vector<8x256xf32>
    %7 = arith.mulf %6, %4 : vector<8x256xf32>
    %cst_4 = arith.constant 1.000000e+00 : f32
    %8 = vector.broadcast %cst_4 : f32 to vector<8x256xf32>
    %9 = arith.subf %3, %8 : vector<8x256xf32>
    %cst_5 = arith.constant 0.000000e+00 : f32
    %10 = vector.broadcast %cst_5 : f32 to vector<8x256xf32>
    %11 = arith.maximumf %9, %10 : vector<8x256xf32>
    %12 = math.absf %9 : vector<8x256xf32>
    %cst_6 = arith.constant 0.000000e+00 : f32
    %13 = vector.broadcast %cst_6 : f32 to vector<8x256xf32>
    %14 = arith.subf %13, %12 : vector<8x256xf32>
    %15 = math.exp %14 : vector<8x256xf32>
    %16 = math.log1p %15 : vector<8x256xf32>
    %17 = arith.addf %11, %16 : vector<8x256xf32>
    %c0_7 = arith.constant 0 : index
    %c0_8 = arith.constant 0 : index
    %18 = vector.load %arg5[%c0_7, %c0_8] : memref<8x256xf32, #tpu.memory_space<vmem>>, vector<8x256xf32>
    %cst_9 = arith.constant 2.500000e-01 : f32
    %19 = vector.broadcast %cst_9 : f32 to vector<8x256xf32>
    %20 = arith.mulf %19, %7 : vector<8x256xf32>
    %cst_10 = arith.constant 2.44140625E-4 : f32
    %21 = vector.broadcast %cst_10 : f32 to vector<8x256xf32>
    %22 = arith.mulf %21, %17 : vector<8x256xf32>
    %23 = arith.addf %20, %22 : vector<8x256xf32>
    %24 = arith.addf %18, %23 : vector<8x256xf32>
    %c0_11 = arith.constant 0 : index
    %c0_12 = arith.constant 0 : index
    %25 = vector.load %arg5[%c0_11, %c0_12] : memref<8x256xf32, #tpu.memory_space<vmem>>, vector<8x256xf32>
    tpu.vector_store %arg5[%c0_11, %c0_12], %24 {strides = array<i32>} : memref<8x256xf32, #tpu.memory_space<vmem>>, vector<8x256xf32>,
    %c0_i32_13 = arith.constant 0 : i32
    %26 = arith.cmpi eq, %arg1, %c0_i32_13 : i32
    %27 = arith.extui %26 : i1 to i32
    %c0_i32_14 = arith.constant 0 : i32
    %28 = arith.cmpi ne, %27, %c0_i32_14 : i32
    scf.if %28 {
      %c0_15 = arith.constant 0 : index
      %c0_16 = arith.constant 0 : index
      %29 = vector.load %arg5[%c0_15, %c0_16] : memref<8x256xf32, #tpu.memory_space<vmem>>, vector<8x256xf32>
      %cst_17 = arith.constant dense<0.000000e+00> : vector<8xf32>
      %30 = vector.multi_reduction <add>, %29, %cst_17 [1] : vector<8x256xf32> to vector<8xf32>
      %31 = vector.shape_cast %30 : vector<8xf32> to vector<8x1xf32>
      %cst_18 = arith.constant dense<0.000000e+00> : vector<1xf32>
      %32 = vector.multi_reduction <add>, %31, %cst_18 [0] : vector<8x1xf32> to vector<1xf32>
      %33 = vector.shape_cast %32 : vector<1xf32> to vector<1x1xf32>
      %34 = vector.shape_cast %33 : vector<1x1xf32> to vector<1x1x1xf32>
      %c0_19 = arith.constant 0 : index
      %c0_20 = arith.constant 0 : index
      %c0_21 = arith.constant 0 : index
      %35 = vector.load %arg4[%c0_19, %c0_20, %c0_21] : memref<1x1x1xf32, #tpu.memory_space<vmem>>, vector<1x1x1xf32>
      tpu.vector_store %arg4[%c0_19, %c0_20, %c0_21], %34 {strides = array<i32>} : memref<1x1x1xf32, #tpu.memory_space<vmem>>, vector<1x1x1xf32>,
    } else {
    }
    return
  }
  func.func @transform_0(%arg0: i32, %arg1: i32) -> (i32, i32) {
    %c1_i32 = arith.constant 1 : i32
    %0 = arith.muli %arg0, %c1_i32 : i32
    %1 = arith.addi %0, %arg1 : i32
    %c0_i32 = arith.constant 0 : i32
    %c0_i32_0 = arith.constant 0 : i32
    return %c0_i32, %1 : i32, i32
  }
  func.func @transform_1(%arg0: i32, %arg1: i32) -> (i32, i32) {
    %c1_i32 = arith.constant 1 : i32
    %0 = arith.muli %arg0, %c1_i32 : i32
    %1 = arith.addi %0, %arg1 : i32
    %c0_i32 = arith.constant 0 : i32
    %c0_i32_0 = arith.constant 0 : i32
    return %c0_i32, %1 : i32, i32
  }
  func.func @transform_2(%arg0: i32, %arg1: i32) -> (i32, i32, i32) {
    %c0_i32 = arith.constant 0 : i32
    %c0_i32_0 = arith.constant 0 : i32
    %c0_i32_1 = arith.constant 0 : i32
    return %arg0, %c0_i32, %c0_i32_0 : i32, i32, i32
  }
}

</mosaic_0001>

<llo_original>
// kernel: tpu_custom_call.1
$region0: #{tpu_custom_call.1}
  #allocation0 [shape = 'u32[]', space=smem, size = 0x4, offset = 0x4, fixed_abs, tag = 'smem constant byte address 0x4 - core index']
  #allocation1 [shape = 'u32[72,128]{1,0:T(1,128)}', space=vmem, size = 0x9000, scoped, tag = 'internal scratch']
  #allocation2 [shape = 'f32[8,256]{1,0:T(8,128)}', space=vmem, size = 0x2000, scoped, tag = 'scratch operand']
  %s0 = inlined_call_operand.hbm [shape: f32[8,256], index: 0, kind: input, shape index: {}]
  %s1 = inlined_call_operand.hbm [shape: f32[8,256], index: 1, kind: input, shape index: {}]
  %s2 = inlined_call_operand.hbm [shape: f32[1,1,1], index: 2, kind: output, shape index: {}]
  %s3 = sld [smem:[#allocation0]]
  $region34: #{tpu_custom_call.1} parent=0
    _
  %s5 = ssub.s32 1, %s3
  %s6 = scalar_select 0, %s5, %s3
  $region1: #{tpu_custom_call.1} parent=0
    #allocation3 [shape = 'u8[8192]{0}', space=vmem, size = 0x2000, scoped, tag = 'input window, operand 0, single buffered']
    #allocation4 [shape = 's32[1]{0}', space=sflag, size = 0x4, scoped, tag = 'scoped memory for tpu_custom_call.1']
    #allocation5 [shape = 's32[1]{0}', space=sflag, size = 0x4, scoped, tag = 'scoped memory for tpu_custom_call.1']
    #allocation6 [shape = 'u8[8192]{0}', space=vmem, size = 0x2000, scoped, tag = 'input window, operand 1, single buffered']
    #allocation7 [shape = 's32[1]{0}', space=sflag, size = 0x4, scoped, tag = 'scoped memory for tpu_custom_call.1']
    #allocation8 [shape = 'u8[512]{0}', space=vmem, size = 0x400, scoped, tag = 'output window, operand 0, single buffered']
    %7 = vsyncpa [#allocation4], 0
    %8 = vsyncpa [#allocation7], 0
    %9 = vsyncpa [#allocation5], 0
    // Predicated region
    $region2: #{tpu_custom_call.1} parent=1 // pred_check
      _
    $region3: #{tpu_custom_call.1} parent=1 // pred_check_branch
      %11 = sbr.rel (0) target = $region5
    $region4: #{tpu_custom_call.1} parent=1 // pred_region
      %s12 = sadd.s32 0, 0
      %s13 = smul.u32 2, %s12
      %15 = vsyncadd [#allocation4], 0
      %s16 = smul.addr %s13, 8
      %s17 = scalar_lea.hbm %s0, %s16
      %s19 = sshll.u32 %s17, 4
      %s20 = int_to_ptr.hbm [resolvable:$true] %s19
      %s21 = sshll.u32 [#allocation3], 4
      %s22 = int_to_ptr.vmem [resolvable:$true] %s21
      %24 = dma.hbm_to_vmem [thread:$0]  %s20, 256, %s22, [#allocation4]
    $region5: #{tpu_custom_call.1} parent=1 // pred_fallthru
      _
    // Predicated region
    $region6: #{tpu_custom_call.1} parent=1 // pred_check
      _
    $region7: #{tpu_custom_call.1} parent=1 // pred_check_branch
      %26 = sbr.rel (0) target = $region9
    $region8: #{tpu_custom_call.1} parent=1 // pred_region
      %s27 = sadd.s32 0, 0
      %s28 = smul.u32 2, %s27
      %30 = vsyncadd [#allocation7], 0
      %s31 = smul.addr %s28, 8
      %s32 = scalar_lea.hbm %s1, %s31
      %s34 = sshll.u32 %s32, 4
      %s35 = int_to_ptr.hbm [resolvable:$true] %s34
      %s36 = sshll.u32 [#allocation6], 4
      %s37 = int_to_ptr.vmem [resolvable:$true] %s36
      %39 = dma.hbm_to_vmem [thread:$0]  %s35, 256, %s37, [#allocation7]
    $region9: #{tpu_custom_call.1} parent=1 // pred_fallthru
      _
    // Predicated region
    $region10: #{tpu_custom_call.1} parent=1 // pred_check
      _
    $region11: #{tpu_custom_call.1} parent=1 // pred_check_branch
      %41 = sbr.rel (0) target = $region13
    $region12: #{tpu_custom_call.1} parent=1 // pred_region
      %43 = dma.done [#allocation4], 256
    $region13: #{tpu_custom_call.1} parent=1 // pred_fallthru
      _
    // Predicated region
    $region14: #{tpu_custom_call.1} parent=1 // pred_check
      _
    $region15: #{tpu_custom_call.1} parent=1 // pred_check_branch
      %45 = sbr.rel (0) target = $region17
    $region16: #{tpu_custom_call.1} parent=1 // pred_region
      %47 = dma.done [#allocation7], 256
    $region17: #{tpu_custom_call.1} parent=1 // pred_fallthru
      _
    %s48 = sadd.s32 0, 0
    %s49 = smul.u32 2, %s48
    %s50 = sadd.s32 0, 0
    %s51 = smul.u32 2, %s50
    %p52 = scmp.eq.s32.totalorder 0, 0
    // Predicated region
    $region18: #{tpu_custom_call.1} parent=1 // pred_check
      %p53 = pneg %p52
    $region19: #{tpu_custom_call.1} parent=1 // pred_check_branch
      %55 = sbr.rel (%p53) target = $region21
    $region20: #{tpu_custom_call.1} parent=1 // pred_region
      %56 = vst [vmem:[#allocation2] sm:$0xff] 0.0
      %57 = vst [vmem:[#allocation2 + $0x8] sm:$0xff] 0.0
    $region21: #{tpu_custom_call.1} parent=1 // pred_fallthru
      _
    %v58 = vld [vmem:[#allocation3] sm:$0xff]
    %v59 = vld [vmem:[#allocation3 + $0x8] sm:$0xff]
    %v60 = vld [vmem:[#allocation6] sm:$0xff]
    %v61 = vld [vmem:[#allocation6 + $0x8] sm:$0xff]
    %v62 = vmax.f32 %v58, 0.0
    %v63 = vmax.f32 %v59, 0.0
    %v64 = vmul.f32 %v62, %v60
    %v65 = vmul.f32 %v63, %v61
    %v66 = vsub.f32 %v58, 1.0
    %v67 = vsub.f32 %v59, 1.0
    %v68 = vmax.f32 %v66, 0.0
    %v69 = vmax.f32 %v67, 0.0
    %v70 = vand.u32 2147483647, %v66
    %v71 = vand.u32 2147483647, %v67
    %v72 = vsub.f32 0.0, %v70
    %v73 = vsub.f32 0.0, %v71
    %v74 = vmul.f32 %v72, 1.442695
    %v75 = vpow.pop %v74
    %v76 = vmul.f32 %v73, 1.442695
    %v77 = vpow.pop %v76
    %v78 = vadd.f32 %v75, 1.0
    %v79 = vlog2.pop %v78
    %v80 = vmul.f32 %v79, 0.6931472
    %v81 = vmul.f32 -0.5, %v75
    %v82 = vadd.f32 %v81, 1.0
    %v83 = vmul.f32 %v82, %v75
    %v84 = vand.u32 2147483647, %v75
    %vm85 = vcmp.lt.f32.partialorder %v84, 0.0004427343
    %v86 = vsel %vm85, %v83, %v80
    %v87 = vadd.f32 %v77, 1.0
    %v88 = vlog2.pop %v87
    %v89 = vmul.f32 %v88, 0.6931472
    %v90 = vmul.f32 -0.5, %v77
    %v91 = vadd.f32 %v90, 1.0
    %v92 = vmul.f32 %v91, %v77
    %v93 = vand.u32 2147483647, %v77
    %vm94 = vcmp.lt.f32.partialorder %v93, 0.0004427343
    %v95 = vsel %vm94, %v92, %v89
    %v96 = vadd.f32 %v68, %v86
    %v97 = vadd.f32 %v69, %v95
    %v98 = vld [vmem:[#allocation2] sm:$0xff]
    %v99 = vld [vmem:[#allocation2 + $0x8] sm:$0xff]
    %v100 = vmul.f32 %v64, 0.25
    %v101 = vmul.f32 %v65, 0.25
    %v102 = vmul.f32 %v96, 0.00024414063
    %v103 = vmul.f32 %v97, 0.00024414063
    %v104 = vadd.f32 %v100, %v102
    %v105 = vadd.f32 %v101, %v103
    %v106 = vadd.f32 %v98, %v104
    %v107 = vadd.f32 %v99, %v105
    %108 = vst [vmem:[#allocation2] sm:$0xff] %v106
    %109 = vst [vmem:[#allocation2 + $0x8] sm:$0xff] %v107
    // Predicated region
    $region22: #{tpu_custom_call.1} parent=1 // pred_check
      %p110 = pneg %p52
    $region23: #{tpu_custom_call.1} parent=1 // pred_check_branch
      %112 = sbr.rel (%p110) target = $region25
    $region24: #{tpu_custom_call.1} parent=1 // pred_region
      %v113 = vld [vmem:[#allocation2] sm:$0xff]
      %v114 = vld [vmem:[#allocation2 + $0x8] sm:$0xff]
      %v115 = vadd.f32 %v113, %v114
      %116 = vadd.xlane.f32.xlu0 %v115
      %v117 = vpop.xlane.xlu0 %116
      %v118 = vrot.slane %v117, 4
      %v119 = vadd.f32 %v117, %v118
      %v120 = vrot.slane %v119, 2
      %v121 = vadd.f32 %v119, %v120
      %v122 = vrot.slane %v121, 1
      %v123 = vadd.f32 %v121, %v122
      %vm124 = vcmask 0
      %125 = vst.msk [vmem:[#allocation8] sm:$0x1] %vm124, %v123
    $region25: #{tpu_custom_call.1} parent=1 // pred_fallthru
      _
    // Predicated region
    $region26: #{tpu_custom_call.1} parent=1 // pred_check
      _
    $region27: #{tpu_custom_call.1} parent=1 // pred_check_branch
      %127 = sbr.rel (0) target = $region29
    $region28: #{tpu_custom_call.1} parent=1 // pred_region
      %129 = vsyncadd [#allocation5], 0
      %s131 = sshll.u32 [#allocation8], 4
      %s132 = int_to_ptr.vmem [resolvable:$true] %s131
      %s133 = sshll.u32 %s2, 4
      %s134 = int_to_ptr.hbm [resolvable:$true] %s133
      %136 = dma.vmem_to_hbm [thread:$0]  %s132, 16, %s134, [#allocation5]
    $region29: #{tpu_custom_call.1} parent=1 // pred_fallthru
      _
    // Predicated region
    $region30: #{tpu_custom_call.1} parent=1 // pred_check
      _
    $region31: #{tpu_custom_call.1} parent=1 // pred_check_branch
      %138 = sbr.rel (0) target = $region33
    $region32: #{tpu_custom_call.1} parent=1 // pred_region
      %140 = dma.done [#allocation5], 16
    $region33: #{tpu_custom_call.1} parent=1 // pred_fallthru
      _
    %141 = vsyncpa [#allocation4], 1
    %142 = vsyncpa [#allocation7], 1
    %143 = vsyncpa [#allocation5], 1

</llo_original>
